<compile_context>
chip_gen: v5e
topology: v5e:2x2
jax: 0.10.0
libtpu: 0.0.40
codegen_flags: <defaults>
</compile_context>

<pallas_src>
import functools

import jax
import jax.numpy as jnp
from jax.experimental import pallas as pl
from jax.experimental.pallas import tpu as pltpu


def _round_up(n, m):
    return ((n + m - 1) // m) * m


def _pick_k_tile(d_in, max_tk=512):
    """K tile: full D_in when small, else an exact multiple-of-128 divisor."""
    if d_in <= max_tk:
        return d_in
    for tk in (512, 384, 256, 128):
        if d_in % tk == 0:
            return tk
    # TODO(synk): a ragged K tile would accumulate padded garbage into valid
    # output rows, so fall back to a single full-K block (costs VMEM) instead.
    return d_in


def _residual_kernel(x_ref, y_ref, w_ref, b_ref, o_ref, acc_ref, *, num_learners):
    """o = x @ W_eff + b_eff - L*y, K-tiled with an f32 accumulator (P3 pattern)."""
    k = pl.program_id(2)

    @pl.when(k == 0)
    def _():
        acc_ref[...] = jnp.zeros_like(acc_ref)

    acc_ref[...] += jnp.dot(
        x_ref[...], w_ref[...], preferred_element_type=jnp.float32
    )

    @pl.when(k == pl.num_programs(2) - 1)
    def _():
        o_ref[...] = (
            acc_ref[...]
            + b_ref[...]
            - jnp.float32(num_learners) * y_ref[...].astype(jnp.float32)
        ).astype(o_ref.dtype)


def residual_forward(
    x, y, Wg, bg, Wl, bl, *,
    operand_dtype=None,          # e.g. jnp.bfloat16 on v5e / MXU-bound shapes
    force_pallas=False,
    small_fallback_elems=65536,  # below B*D_out of this, plain XLA wins on overhead
):
    """sum over learners of (func_grad_l(x, y) - weak_learner_l(x)).

    x : (B, D_in)        y : (B, D_out)
    Wg, Wl : (L, D_in, D_out)      bg, bl : (L, 1, D_out)
    Returns (B, D_out) float32, or the Python float 0.0 if L == 0
    (matching the PyTorch module's empty-list behavior).
    """
    L = Wg.shape[0]
    if L == 0:
        # TODO(synk): PyTorch returns the scalar 0.0 for the empty module; this
        # mirrors it but is not shape/dtype-stable under jit/vmap of the wrapper.
        return 0.0

    B, D_in = x.shape
    D_out = y.shape[1]

    # Learner reduction always in f32 (even if operands are later cast to bf16).
    W_eff = jnp.sum(Wg.astype(jnp.float32) - Wl.astype(jnp.float32), axis=0)  # (D_in, D_out)
    b_eff = jnp.sum(bg.astype(jnp.float32) - bl.astype(jnp.float32), axis=0)  # (1, D_out)

    if operand_dtype is not None:
        x_op = x.astype(operand_dtype)
        w_op = W_eff.astype(operand_dtype)
    else:
        x_op = x
        w_op = W_eff

    # Small-problem cutoff: one fused XLA op beats per-step grid + launch cost.
    if (not force_pallas) and (B * D_out < small_fallback_elems):
        return (
            jnp.dot(x_op, w_op, preferred_element_type=jnp.float32)
            + b_eff
            - jnp.float32(L) * y.astype(jnp.float32)
        )

    # --- tiling --------------------------------------------------------------
    # Batch: always tile; ragged last tile is fine as long as tb % 8 == 0.
    # (For B > 512 this also yields >=2 programs so v7x megacore can shard.)
    tb = min(_round_up(B, 8), 512)
    # D_out: full dim when small (block == full-dim exemption), else lane-dense 512.
    tn = D_out if D_out <= 512 else 512
    # D_in: full when small, else an exact multiple-of-128 divisor (no ragged K).
    tk = _pick_k_tile(D_in)

    nb = pl.cdiv(B, tb)
    nn = pl.cdiv(D_out, tn)
    nk = pl.cdiv(D_in, tk)

    # W_eff / b_eff blocks never change when nn == nk == 1: single-buffer them
    # (only when big enough to matter — frees VMEM under v7x's 64 MiB budget).
    w_itemsize = jnp.dtype(w_op.dtype).itemsize
    constant_weight_block = (nn == 1 and nk == 1)
    single_buffer_weights = constant_weight_block and (tk * tn * w_itemsize >= (1 << 20))
    w_pipeline = dict(pipeline_mode=pl.Buffered(1)) if single_buffer_weights else {}

    # --- VMEM budget (double-buffered streams + weights + accumulator) -------
    x_itemsize = jnp.dtype(x_op.dtype).itemsize
    y_itemsize = jnp.dtype(y.dtype).itemsize
    w_bufs = 1 if single_buffer_weights else 2
    footprint = (
        2 * tb * tk * x_itemsize          # x tiles (double-buffered)
        + 2 * tb * tn * y_itemsize        # y tiles
        + 2 * tb * tn * 4                 # out tiles (f32)
        + w_bufs * tk * tn * w_itemsize   # W_eff tile(s)
        + w_bufs * 8 * tn * 4             # b_eff tile(s), (1, tn) pads to 8 sublanes
        + tb * tn * 4                     # accumulator scratch
    )
    vmem_limit = int(min(max(32 * 1024 * 1024, footprint * 1.25), 64 * 1024 * 1024))

    kernel = functools.partial(_residual_kernel, num_learners=L)

    return pl.pallas_call(
        kernel,
        out_shape=jax.ShapeDtypeStruct((B, D_out), jnp.float32),
        grid_spec=pltpu.PrefetchScalarGridSpec(
            num_scalar_prefetch=0,
            grid=(nb, nn, nk),
            in_specs=[
                pl.BlockSpec((tb, tk), lambda i, j, k: (i, k)),                # x
                pl.BlockSpec((tb, tn), lambda i, j, k: (i, j)),                # y
                pl.BlockSpec((tk, tn), lambda i, j, k: (k, j), **w_pipeline),  # W_eff
                pl.BlockSpec((1, tn), lambda i, j, k: (0, j), **w_pipeline),   # b_eff
            ],
            out_specs=pl.BlockSpec((tb, tn), lambda i, j, k: (i, j)),
            scratch_shapes=[pltpu.VMEM((tb, tn), jnp.float32)],
        ),
        compiler_params=pltpu.CompilerParams(
            dimension_semantics=("parallel", "parallel", "arbitrary"),
            vmem_limit_bytes=vmem_limit,
        ),
    )(x_op, y, w_op, b_eff)


def _reference(x, y, Wg, bg, Wl, bl):
    terms = []
    for l in range(Wg.shape[0]):
        fg = x @ Wg[l] + bg[l] - y
        wl = x @ Wl[l] + bl[l]
        terms.append(fg - wl)
    return jnp.sum(jnp.stack(terms), axis=0)


if __name__ == "__main__":
    B, D_in, D_out, L = 8, 32, 128, 3

    key = jax.random.PRNGKey(0)
    kx, ky, kwg, kbg, kwl, kbl = jax.random.split(key, 6)

    x = jax.random.normal(kx, (B, D_in), dtype=jnp.float32)
    y = jax.random.normal(ky, (B, D_out), dtype=jnp.float32)

    # Deterministic synthetic parameters for the L (func_grad, weak_learner) pairs.
    Wg = jax.random.normal(kwg, (L, D_in, D_out), dtype=jnp.float32) * 0.1
    bg = jax.random.normal(kbg, (L, 1, D_out), dtype=jnp.float32) * 0.1
    Wl = jax.random.normal(kwl, (L, D_in, D_out), dtype=jnp.float32) * 0.1
    bl = jax.random.normal(kbl, (L, 1, D_out), dtype=jnp.float32) * 0.1

    ref = _reference(x, y, Wg, bg, Wl, bl)

    # 1) Pallas kernel path (force past the small-problem XLA fallback).
    out = jax.block_until_ready(
        residual_forward(x, y, Wg, bg, Wl, bl, force_pallas=True)
    )
    assert out.shape == (B, D_out)
    assert out.dtype == jnp.float32
    assert jnp.allclose(out, ref, atol=1e-4, rtol=1e-4), "pallas f32 mismatch vs reference"

    # 2) Default path at this tiny size takes the fused-XLA fallback; same result.
    out_fb = jax.block_until_ready(residual_forward(x, y, Wg, bg, Wl, bl))
    assert jnp.allclose(out_fb, ref, atol=1e-4, rtol=1e-4), "xla fallback mismatch"

    # 3) bf16-operand path (v5e / MXU-bound shapes), f32 accumulation in the MXU.
    out_bf16 = jax.block_until_ready(
        residual_forward(
            x, y, Wg, bg, Wl, bl, operand_dtype=jnp.bfloat16, force_pallas=True
        )
    )
    assert jnp.allclose(out_bf16, ref, atol=1e-1, rtol=1e-1), "pallas bf16 mismatch"

    # 4) Empty-learner case mirrors the PyTorch module: returns the scalar 0.0.
    empty = residual_forward(
        x, y,
        jnp.zeros((0, D_in, D_out), jnp.float32), jnp.zeros((0, 1, D_out), jnp.float32),
        jnp.zeros((0, D_in, D_out), jnp.float32), jnp.zeros((0, 1, D_out), jnp.float32),
    )
    assert empty == 0.0

    print("KERNEL_OK")
</pallas_src>

<mosaic_0001>
module attributes {stable_mosaic.version = 11 : i64} {
  func.func @_residual_kernel(%arg0: i32, %arg1: i32, %arg2: i32, %arg3: memref<8x32xf32, #tpu.memory_space<vmem>>, %arg4: memref<8x128xf32, #tpu.memory_space<vmem>>, %arg5: memref<32x128xf32, #tpu.memory_space<vmem>>, %arg6: memref<1x128xf32, #tpu.memory_space<vmem>>, %arg7: memref<8x128xf32, #tpu.memory_space<vmem>>, %arg8: memref<8x128xf32, #tpu.memory_space<vmem>>) attributes {dimension_semantics = [#tpu.dimension_semantics<parallel>, #tpu.dimension_semantics<parallel>, #tpu.dimension_semantics<arbitrary>], iteration_bounds = array<i64: 1, 1, 1>, scalar_prefetch = 0 : i64, scratch_operands = 1 : i64, tpu.core_type = #tpu.core_type<tc>, window_params = [{transform_indices = @transform_0, window_bounds = array<i64: 8, 32>}, {transform_indices = @transform_1, window_bounds = array<i64: 8, 128>}, {transform_indices = @transform_2, window_bounds = array<i64: 32, 128>}, {transform_indices = @transform_3, window_bounds = array<i64: 1, 128>}, {transform_indices = @transform_4, window_bounds = array<i64: 8, 128>}]} {
    %c0_i32 = arith.constant 0 : i32
    %0 = arith.cmpi eq, %arg2, %c0_i32 : i32
    %1 = arith.extui %0 : i1 to i32
    %c0_i32_0 = arith.constant 0 : i32
    %2 = arith.cmpi ne, %1, %c0_i32_0 : i32
    scf.if %2 {
      %cst_10 = arith.constant 0.000000e+00 : f32
      %12 = vector.broadcast %cst_10 : f32 to vector<8x128xf32>
      %c0_11 = arith.constant 0 : index
      %c0_12 = arith.constant 0 : index
      %13 = vector.load %arg8[%c0_11, %c0_12] : memref<8x128xf32, #tpu.memory_space<vmem>>, vector<8x128xf32>
      tpu.vector_store %arg8[%c0_11, %c0_12], %12 {strides = array<i32>} : memref<8x128xf32, #tpu.memory_space<vmem>>, vector<8x128xf32>,
    } else {
    }
    %c0 = arith.constant 0 : index
    %c0_1 = arith.constant 0 : index
    %3 = vector.load %arg8[%c0, %c0_1] : memref<8x128xf32, #tpu.memory_space<vmem>>, vector<8x128xf32>
    %c0_2 = arith.constant 0 : index
    %c0_3 = arith.constant 0 : index
    %4 = vector.load %arg3[%c0_2, %c0_3] : memref<8x32xf32, #tpu.memory_space<vmem>>, vector<8x32xf32>
    %c0_4 = arith.constant 0 : index
    %c0_5 = arith.constant 0 : index
    %5 = vector.load %arg5[%c0_4, %c0_5] : memref<32x128xf32, #tpu.memory_space<vmem>>, vector<32x128xf32>
    %cst = arith.constant dense<0.000000e+00> : vector<8x128xf32>
    %6 = tpu.matmul %4, %5, %cst {dimension_numbers = #tpu.dot_dimension_numbers<[1], [0], [0], [1], [0, 0, 1, 1], [], []>} : vector<8x32xf32>, vector<32x128xf32>, vector<8x128xf32> -> vector<8x128xf32>
    %7 = arith.addf %3, %6 : vector<8x128xf32>
    %c0_6 = arith.constant 0 : index
    %c0_7 = arith.constant 0 : index
    %8 = vector.load %arg8[%c0_6, %c0_7] : memref<8x128xf32, #tpu.memory_space<vmem>>, vector<8x128xf32>
    tpu.vector_store %arg8[%c0_6, %c0_7], %7 {strides = array<i32>} : memref<8x128xf32, #tpu.memory_space<vmem>>, vector<8x128xf32>,
    %c0_i32_8 = arith.constant 0 : i32
    %9 = arith.cmpi eq, %arg2, %c0_i32_8 : i32
    %10 = arith.extui %9 : i1 to i32
    %c0_i32_9 = arith.constant 0 : i32
    %11 = arith.cmpi ne, %10, %c0_i32_9 : i32
    scf.if %11 {
      %c0_10 = arith.constant 0 : index
      %c0_11 = arith.constant 0 : index
      %12 = vector.load %arg8[%c0_10, %c0_11] : memref<8x128xf32, #tpu.memory_space<vmem>>, vector<8x128xf32>
      %c0_12 = arith.constant 0 : index
      %c0_13 = arith.constant 0 : index
      %13 = vector.load %arg6[%c0_12, %c0_13] : memref<1x128xf32, #tpu.memory_space<vmem>>, vector<1x128xf32>
      %14 = vector.broadcast %13 : vector<1x128xf32> to vector<8x128xf32>
      %15 = arith.addf %12, %14 : vector<8x128xf32>
      %c0_14 = arith.constant 0 : index
      %c0_15 = arith.constant 0 : index
      %16 = vector.load %arg4[%c0_14, %c0_15] : memref<8x128xf32, #tpu.memory_space<vmem>>, vector<8x128xf32>
      %cst_16 = arith.constant 3.000000e+00 : f32
      %17 = vector.broadcast %cst_16 : f32 to vector<8x128xf32>
      %18 = arith.mulf %17, %16 : vector<8x128xf32>
      %19 = arith.subf %15, %18 : vector<8x128xf32>
      %c0_17 = arith.constant 0 : index
      %c0_18 = arith.constant 0 : index
      %20 = vector.load %arg7[%c0_17, %c0_18] : memref<8x128xf32, #tpu.memory_space<vmem>>, vector<8x128xf32>
      tpu.vector_store %arg7[%c0_17, %c0_18], %19 {strides = array<i32>} : memref<8x128xf32, #tpu.memory_space<vmem>>, vector<8x128xf32>,
    } else {
    }
    return
  }
  func.func @transform_0(%arg0: i32, %arg1: i32, %arg2: i32) -> (i32, i32) {
    %c0_i32 = arith.constant 0 : i32
    return %arg0, %arg2 : i32, i32
  }
  func.func @transform_1(%arg0: i32, %arg1: i32, %arg2: i32) -> (i32, i32) {
    %c0_i32 = arith.constant 0 : i32
    return %arg0, %arg1 : i32, i32
  }
  func.func @transform_2(%arg0: i32, %arg1: i32, %arg2: i32) -> (i32, i32) {
    %c0_i32 = arith.constant 0 : i32
    return %arg2, %arg1 : i32, i32
  }
  func.func @transform_3(%arg0: i32, %arg1: i32, %arg2: i32) -> (i32, i32) {
    %c0_i32 = arith.constant 0 : i32
    %c0_i32_0 = arith.constant 0 : i32
    return %c0_i32, %arg1 : i32, i32
  }
  func.func @transform_4(%arg0: i32, %arg1: i32, %arg2: i32) -> (i32, i32) {
    %c0_i32 = arith.constant 0 : i32
    return %arg0, %arg1 : i32, i32
  }
}

</mosaic_0001>

<llo_original>
// kernel: tpu_custom_call.1
$region0: #{tpu_custom_call.1}
  #allocation0 [shape = 'u32[]', space=smem, size = 0x4, offset = 0x4, fixed_abs, tag = 'smem constant byte address 0x4 - core index']
  #allocation1 [shape = 'u32[72,128]{1,0:T(1,128)}', space=vmem, size = 0x9000, scoped, tag = 'internal scratch']
  #allocation2 [shape = 'f32[8,128]{1,0:T(8,128)}', space=vmem, size = 0x1000, scoped, tag = 'scratch operand']
  %s0 = inlined_call_operand.hbm [shape: f32[8,32], index: 0, kind: input, shape index: {}]
  %s1 = inlined_call_operand.hbm [shape: f32[8,128], index: 1, kind: input, shape index: {}]
  %s2 = inlined_call_operand.hbm [shape: f32[32,128], index: 2, kind: input, shape index: {}]
  %s3 = inlined_call_operand.vmem [shape: f32[1,128], index: 3, kind: input, shape index: {}]
  %s4 = inlined_call_operand.hbm [shape: f32[8,128], index: 4, kind: output, shape index: {}]
  %s5 = sld [smem:[#allocation0]]
  $region46: #{tpu_custom_call.1} parent=0
    _
  %s7 = ssub.s32 1, %s5
  %s8 = scalar_select 0, %s7, %s5
  $region1: #{tpu_custom_call.1} parent=0
    #allocation3 [shape = 'u8[4096]{0}', space=vmem, size = 0x1000, scoped, tag = 'input window, operand 0, single buffered']
    #allocation4 [shape = 's32[1]{0}', space=sflag, size = 0x4, scoped, tag = 'scoped memory for tpu_custom_call.1']
    #allocation5 [shape = 's32[1]{0}', space=sflag, size = 0x4, scoped, tag = 'scoped memory for tpu_custom_call.1']
    #allocation6 [shape = 'u8[4096]{0}', space=vmem, size = 0x1000, scoped, tag = 'input window, operand 1, single buffered']
    #allocation7 [shape = 's32[1]{0}', space=sflag, size = 0x4, scoped, tag = 'scoped memory for tpu_custom_call.1']
    #allocation8 [shape = 'u8[16384]{0}', space=vmem, size = 0x4000, scoped, tag = 'input window, operand 2, single buffered']
    #allocation9 [shape = 'u8[4096]{0}', space=vmem, size = 0x1000, scoped, tag = 'output window, operand 0, single buffered']
    %9 = vsyncpa [#allocation4], 0
    %10 = vsyncpa [#allocation7], 0
    %11 = vsyncpa [#allocation5], 0
    // Predicated region
    $region2: #{tpu_custom_call.1} parent=1 // pred_check
      _
    $region3: #{tpu_custom_call.1} parent=1 // pred_check_branch
      %13 = sbr.rel (0) target = $region5
    $region4: #{tpu_custom_call.1} parent=1 // pred_region
      %15 = vsyncadd [#allocation4], 0
      %s17 = sshll.u32 %s0, 4
      %s18 = int_to_ptr.hbm [resolvable:$true] %s17
      %s19 = sshll.u32 [#allocation3], 4
      %s20 = int_to_ptr.vmem [resolvable:$true] %s19
      %22 = dma.hbm_to_vmem [thread:$0]  %s18, 128, %s20, [#allocation4]
    $region5: #{tpu_custom_call.1} parent=1 // pred_fallthru
      _
    // Predicated region
    $region6: #{tpu_custom_call.1} parent=1 // pred_check
      _
    $region7: #{tpu_custom_call.1} parent=1 // pred_check_branch
      %24 = sbr.rel (0) target = $region9
    $region8: #{tpu_custom_call.1} parent=1 // pred_region
      %26 = vsyncadd [#allocation7], 0
      %s28 = sshll.u32 %s1, 4
      %s29 = int_to_ptr.hbm [resolvable:$true] %s28
      %s30 = sshll.u32 [#allocation6], 4
      %s31 = int_to_ptr.vmem [resolvable:$true] %s30
      %33 = dma.hbm_to_vmem [thread:$0]  %s29, 128, %s31, [#allocation7]
    $region9: #{tpu_custom_call.1} parent=1 // pred_fallthru
      _
    // Predicated region
    $region10: #{tpu_custom_call.1} parent=1 // pred_check
      _
    $region11: #{tpu_custom_call.1} parent=1 // pred_check_branch
      %35 = sbr.rel (0) target = $region13
    $region12: #{tpu_custom_call.1} parent=1 // pred_region
      %37 = vsyncadd [#allocation7], 0
      %s38 = sshll.u32 %s2, 4
      %s39 = int_to_ptr.hbm [resolvable:$true] %s38
      %s40 = sshll.u32 [#allocation8], 4
      %s41 = int_to_ptr.vmem [resolvable:$true] %s40
      %46 = dma.hbm_to_vmem [thread:$0]  %s39, 512, %s41, [#allocation7], 128, 128, 8
    $region13: #{tpu_custom_call.1} parent=1 // pred_fallthru
      _
    // Predicated region
    $region14: #{tpu_custom_call.1} parent=1 // pred_check
      _
    $region15: #{tpu_custom_call.1} parent=1 // pred_check_branch
      %48 = sbr.rel (0) target = $region17
    $region16: #{tpu_custom_call.1} parent=1 // pred_region
      _
    $region17: #{tpu_custom_call.1} parent=1 // pred_fallthru
      _
    // Predicated region
    $region18: #{tpu_custom_call.1} parent=1 // pred_check
      _
    $region19: #{tpu_custom_call.1} parent=1 // pred_check_branch
      %50 = sbr.rel (0) target = $region21
    $region20: #{tpu_custom_call.1} parent=1 // pred_region
      %52 = dma.done [#allocation4], 128
    $region21: #{tpu_custom_call.1} parent=1 // pred_fallthru
      _
    // Predicated region
    $region22: #{tpu_custom_call.1} parent=1 // pred_check
      _
    $region23: #{tpu_custom_call.1} parent=1 // pred_check_branch
      %54 = sbr.rel (0) target = $region25
    $region24: #{tpu_custom_call.1} parent=1 // pred_region
      %56 = dma.done [#allocation7], 128
    $region25: #{tpu_custom_call.1} parent=1 // pred_fallthru
      _
    // Predicated region
    $region26: #{tpu_custom_call.1} parent=1 // pred_check
      _
    $region27: #{tpu_custom_call.1} parent=1 // pred_check_branch
      %58 = sbr.rel (0) target = $region29
    $region28: #{tpu_custom_call.1} parent=1 // pred_region
      %60 = dma.done [#allocation7], 512
    $region29: #{tpu_custom_call.1} parent=1 // pred_fallthru
      _
    %p61 = scmp.eq.s32.totalorder 0, 0
    // Predicated region
    $region30: #{tpu_custom_call.1} parent=1 // pred_check
      %p62 = pneg %p61
    $region31: #{tpu_custom_call.1} parent=1 // pred_check_branch
      %64 = sbr.rel (%p62) target = $region33
    $region32: #{tpu_custom_call.1} parent=1 // pred_region
      %65 = vst [vmem:[#allocation2] sm:$0xff] 0.0
    $region33: #{tpu_custom_call.1} parent=1 // pred_fallthru
      _
    %v66 = vld [vmem:[#allocation2] sm:$0xff]
    %v67 = vld [vmem:[#allocation3] sm:$0xff]
    %v68 = vld [vmem:[#allocation8] sm:$0xff]
    %v69 = vld [vmem:[#allocation8 + $0x8] sm:$0xff]
    %v70 = vld [vmem:[#allocation8 + $0x10] sm:$0xff]
    %v71 = vld [vmem:[#allocation8 + $0x18] sm:$0xff]
    %vm72 = vcmask 261120
    %v74 = vsel %vm72, %v67, 0
    %76 = vmatpush.msra.mxu0 0.0
    %77 = vmatpush.msra.mxu0 0.0
    %78 = vmatpush.msra.mxu0 0.0
    %79 = vmatpush.msra.mxu0 0.0
    %80 = vmatpush.msra.mxu0 0.0
    %81 = vmatpush.msra.mxu0 0.0
    %82 = vmatpush.msra.mxu0 0.0
    %83 = vmatpush.msra.mxu0 0.0
    %84 = vmatpush.msra.mxu0 0.0
    %85 = vmatpush.msra.mxu0 0.0
    %86 = vmatpush.msra.mxu0 0.0
    %87 = vmatpush.msra.mxu0 0.0
    %88 = vmatpush.msra.mxu0 %v71
    %89 = vmatpush.msra.mxu0 %v70
    %90 = vmatpush.msra.mxu0 %v69
    %91 = vmatpush.msra.mxu0 %v68
    %92 = vmatmul.f32.gmra.mxu0 %v74
    %v93 = vpop.f32.mrf.mxu0
    %v94 = vadd.f32 0.0, %v93
    %95 = vdwg.mxu0
    %v96 = vadd.f32 %v66, %v94
    %97 = vst [vmem:[#allocation2] sm:$0xff] %v96
    // Predicated region
    $region34: #{tpu_custom_call.1} parent=1 // pred_check
      %p98 = pneg %p61
    $region35: #{tpu_custom_call.1} parent=1 // pred_check_branch
      %100 = sbr.rel (%p98) target = $region37
    $region36: #{tpu_custom_call.1} parent=1 // pred_region
      %v101 = vld [vmem:[#allocation2] sm:$0xff]
      %v102 = vld [vmem:[%s3] sm:$0x1]
      %v104 = vperm.slane %v102, 0
      %v106 = vadd.f32 %v101, %v104
      %v107 = vld [vmem:[#allocation6] sm:$0xff]
      %v108 = vmul.f32 %v107, 3.0
      %v109 = vsub.f32 %v106, %v108
      %110 = vst [vmem:[#allocation9] sm:$0xff] %v109
    $region37: #{tpu_custom_call.1} parent=1 // pred_fallthru
      _
    // Predicated region
    $region38: #{tpu_custom_call.1} parent=1 // pred_check
      _
    $region39: #{tpu_custom_call.1} parent=1 // pred_check_branch
      %112 = sbr.rel (0) target = $region41
    $region40: #{tpu_custom_call.1} parent=1 // pred_region
      %114 = vsyncadd [#allocation5], 0
      %s116 = sshll.u32 [#allocation9], 4
      %s117 = int_to_ptr.vmem [resolvable:$true] %s116
      %s118 = sshll.u32 %s4, 4
      %s119 = int_to_ptr.hbm [resolvable:$true] %s118
      %121 = dma.vmem_to_hbm [thread:$0]  %s117, 128, %s119, [#allocation5]
    $region41: #{tpu_custom_call.1} parent=1 // pred_fallthru
      _
    // Predicated region
    $region42: #{tpu_custom_call.1} parent=1 // pred_check
      _
    $region43: #{tpu_custom_call.1} parent=1 // pred_check_branch
      %123 = sbr.rel (0) target = $region45
    $region44: #{tpu_custom_call.1} parent=1 // pred_region
      %125 = dma.done [#allocation5], 128
    $region45: #{tpu_custom_call.1} parent=1 // pred_fallthru
      _
    %126 = vsyncpa [#allocation4], 1
    %127 = vsyncpa [#allocation7], 1
    %128 = vsyncpa [#allocation5], 1

</llo_original>
